<compile_context>
chip_gen: v5e
topology: v5e:2x2
jax: 0.10.0
libtpu: 0.0.40
codegen_flags: <defaults>
</compile_context>

<pallas_src>
import functools

import jax
import jax.numpy as jnp
from jax.experimental import pallas as pl
from jax.experimental.pallas import tpu as pltpu


def _sampled_xe_kernel(logit_ref, diag_ref, out_ref, acc_ref, *, batch_size):
    """One (TM, C) row tile of mean cross-entropy against target=arange(B)."""
    i = pl.program_id(0)
    tm = logit_ref.shape[0]

    @pl.when(i == 0)
    def _():
        acc_ref[...] = jnp.zeros_like(acc_ref)

    # Numerically stable row-wise logsumexp over the full class dimension.
    x = logit_ref[...].astype(jnp.float32)                      # (TM, C)
    m = jnp.max(x, axis=-1, keepdims=True)                      # (TM, 1)
    lse = jnp.log(jnp.sum(jnp.exp(x - m), axis=-1, keepdims=True)) + m

    # Diagonal logit[i, i] taken from the (TM, TM) block that straddles the
    # diagonal of this row tile (delivered by the second BlockSpec).
    d = diag_ref[...].astype(jnp.float32)                       # (TM, TM)
    loc_r = jax.lax.broadcasted_iota(jnp.int32, d.shape, 0)
    loc_c = jax.lax.broadcasted_iota(jnp.int32, d.shape, 1)
    diag = jnp.sum(jnp.where(loc_r == loc_c, d, 0.0),
                   axis=-1, keepdims=True)                      # (TM, 1)

    per_sample = lse - diag                                     # (TM, 1)

    # Mask rows that fall past B when the last tile is partial.
    row_idx = i * tm + jax.lax.broadcasted_iota(jnp.int32, (tm, 1), 0)
    contrib = jnp.where(row_idx < batch_size, per_sample, 0.0)  # (TM, 1)

    acc_ref[...] += jnp.sum(contrib, axis=0, keepdims=True)     # (1, 1)

    @pl.when(i == pl.num_programs(0) - 1)
    def _():
        out_ref[...] = acc_ref[...] / jnp.float32(batch_size)


def _choose_tm(batch_size, n_classes, itemsize):
    """Pick a row-tile height that keeps blocks VMEM-friendly on v5e/v6e/v7x."""
    # Small problems: one tile (block == full array, always a legal block).
    if batch_size <= 256 or batch_size * n_classes * itemsize <= (4 << 20):
        return batch_size
    # Otherwise target ~4 MiB per (TM, C) block; TM must be a multiple of 128
    # so the (TM, TM) diagonal block is a legal lane-aligned BlockSpec.
    tm = (4 << 20) // (n_classes * itemsize)
    tm = max(128, (tm // 128) * 128)
    return min(tm, batch_size)


def sampled_cross_entropy_loss(logit, *, tm=None):
    """logit: (B, B) float array. Returns scalar float32 mean cross-entropy."""
    B, C = logit.shape
    assert B == C, "n_classes must equal batch_size for SampledCrossEntropyLoss"

    itemsize = jnp.dtype(logit.dtype).itemsize
    TM = tm if tm is not None else _choose_tm(B, C, itemsize)
    num_tiles = pl.cdiv(B, TM)

    # Generous scoped-VMEM request: double-buffered row tile + diagonal tile
    # + in-kernel f32 temporaries, capped for v7x's 64 MiB physical VMEM.
    blk_bytes = TM * C * itemsize + TM * TM * itemsize
    vmem_limit = int(min(64 * 1024 * 1024, max(16 * 1024 * 1024, 8 * blk_bytes)))

    kernel = functools.partial(_sampled_xe_kernel, batch_size=B)

    grid_spec = pltpu.PrefetchScalarGridSpec(
        num_scalar_prefetch=0,
        grid=(num_tiles,),
        in_specs=[
            # Full-width row tile for the logsumexp.
            pl.BlockSpec((TM, C), lambda i: (i, 0)),
            # Diagonal (TM, TM) sub-block of the same array.
            pl.BlockSpec((TM, TM), lambda i: (i, i)),
        ],
        out_specs=pl.BlockSpec((1, 1), lambda i: (0, 0)),
        scratch_shapes=[pltpu.VMEM((1, 1), jnp.float32)],
    )

    out = pl.pallas_call(
        kernel,
        out_shape=jax.ShapeDtypeStruct((1, 1), jnp.float32),
        grid_spec=grid_spec,
        compiler_params=pltpu.CompilerParams(
            # The scalar accumulator carries across the row axis -> sequential.
            dimension_semantics=("arbitrary",),
            vmem_limit_bytes=vmem_limit,
        ),
    )(logit, logit)
    return out[0, 0]


def _reference(logit):
    """Pure-JAX reference of the PyTorch forward (mean cross-entropy vs arange)."""
    x = logit.astype(jnp.float32)
    lse = jax.nn.logsumexp(x, axis=-1)
    diag = jnp.diagonal(x)
    return jnp.mean(lse - diag)


if __name__ == "__main__":
    key = jax.random.PRNGKey(0)

    # Small case matching the module's toy shape: single tile.
    B = 8  # session-parallel mini-batch size; logit is (B, B)
    logit = jax.random.normal(key, (B, B), dtype=jnp.float32)
    loss = jax.block_until_ready(sampled_cross_entropy_loss(logit))
    ref = _reference(logit)
    assert jnp.allclose(loss, ref, rtol=1e-5, atol=1e-4), (loss, ref)

    # Multi-tile case (forced TM=128, B % TM != 0) to exercise the row-tiled
    # accumulator and the partial-last-tile masking path.
    B2 = 320
    logit2 = jax.random.normal(jax.random.PRNGKey(1), (B2, B2), dtype=jnp.float32)
    loss2 = jax.block_until_ready(sampled_cross_entropy_loss(logit2, tm=128))
    ref2 = _reference(logit2)
    assert jnp.allclose(loss2, ref2, rtol=1e-5, atol=1e-4), (loss2, ref2)

    print("KERNEL_OK")
</pallas_src>

<mosaic_0001>
module attributes {stable_mosaic.version = 11 : i64} {
  func.func @_sampled_xe_kernel(%arg0: i32, %arg1: memref<8x8xf32, #tpu.memory_space<vmem>>, %arg2: memref<8x8xf32, #tpu.memory_space<vmem>>, %arg3: memref<1x1xf32, #tpu.memory_space<vmem>>, %arg4: memref<1x1xf32, #tpu.memory_space<vmem>>) attributes {dimension_semantics = [#tpu.dimension_semantics<arbitrary>], iteration_bounds = array<i64: 1>, scalar_prefetch = 0 : i64, scratch_operands = 1 : i64, tpu.core_type = #tpu.core_type<tc>, window_params = [{transform_indices = @transform_0, window_bounds = array<i64: 8, 8>}, {transform_indices = @transform_1, window_bounds = array<i64: 8, 8>}, {pipeline_mode = #tpu.pipeline_mode<synchronous>, transform_indices = @transform_2, window_bounds = array<i64: 1, 1>}]} {
    %c0_i32 = arith.constant 0 : i32
    %0 = arith.cmpi eq, %arg0, %c0_i32 : i32
    %1 = arith.extui %0 : i1 to i32
    %c0_i32_0 = arith.constant 0 : i32
    %2 = arith.cmpi ne, %1, %c0_i32_0 : i32
    scf.if %2 {
      %cst_16 = arith.constant 0.000000e+00 : f32
      %38 = vector.broadcast %cst_16 : f32 to vector<1x1xf32>
      %c0_17 = arith.constant 0 : index
      %c0_18 = arith.constant 0 : index
      %39 = vector.load %arg4[%c0_17, %c0_18] : memref<1x1xf32, #tpu.memory_space<vmem>>, vector<1x1xf32>
      tpu.vector_store %arg4[%c0_17, %c0_18], %38 {strides = array<i32>} : memref<1x1xf32, #tpu.memory_space<vmem>>, vector<1x1xf32>,
    } else {
    }
    %c0 = arith.constant 0 : index
    %c0_1 = arith.constant 0 : index
    %3 = vector.load %arg1[%c0, %c0_1] : memref<8x8xf32, #tpu.memory_space<vmem>>, vector<8x8xf32>
    %cst = arith.constant dense<0xFF800000> : vector<8xf32>
    %4 = vector.multi_reduction <maximumf>, %3, %cst [1] : vector<8x8xf32> to vector<8xf32>
    %5 = vector.shape_cast %4 : vector<8xf32> to vector<8x1xf32>
    %6 = vector.broadcast %5 : vector<8x1xf32> to vector<8x8xf32>
    %7 = arith.subf %3, %6 : vector<8x8xf32>
    %8 = math.exp %7 : vector<8x8xf32>
    %cst_2 = arith.constant dense<0.000000e+00> : vector<8xf32>
    %9 = vector.multi_reduction <add>, %8, %cst_2 [1] : vector<8x8xf32> to vector<8xf32>
    %10 = vector.shape_cast %9 : vector<8xf32> to vector<8x1xf32>
    %11 = math.log %10 : vector<8x1xf32>
    %12 = arith.addf %11, %5 : vector<8x1xf32>
    %c0_3 = arith.constant 0 : index
    %c0_4 = arith.constant 0 : index
    %13 = vector.load %arg2[%c0_3, %c0_4] : memref<8x8xf32, #tpu.memory_space<vmem>>, vector<8x8xf32>
    %14 = tpu.iota {dimensions = array<i32: 0>} : vector<8x8xi32>
    %15 = tpu.iota {dimensions = array<i32: 1>} : vector<8x8xi32>
    %16 = arith.cmpi eq, %14, %15 : vector<8x8xi32>
    %cst_5 = arith.constant 0.000000e+00 : f32
    %17 = vector.broadcast %cst_5 : f32 to vector<8x8xf32>
    %18 = arith.select %16, %13, %17 : vector<8x8xi1>, vector<8x8xf32>
    %cst_6 = arith.constant dense<0.000000e+00> : vector<8xf32>
    %19 = vector.multi_reduction <add>, %18, %cst_6 [1] : vector<8x8xf32> to vector<8xf32>
    %20 = vector.shape_cast %19 : vector<8xf32> to vector<8x1xf32>
    %21 = arith.subf %12, %20 : vector<8x1xf32>
    %c8_i32 = arith.constant 8 : i32
    %22 = arith.muli %arg0, %c8_i32 : i32
    %23 = tpu.iota {dimensions = array<i32: 0>} : vector<8x1xi32>
    %24 = vector.broadcast %22 : i32 to vector<8x1xi32>
    %25 = arith.addi %24, %23 : vector<8x1xi32>
    %c8_i32_7 = arith.constant 8 : i32
    %26 = vector.broadcast %c8_i32_7 : i32 to vector<8x1xi32>
    %27 = arith.cmpi slt, %25, %26 : vector<8x1xi32>
    %cst_8 = arith.constant 0.000000e+00 : f32
    %28 = vector.broadcast %cst_8 : f32 to vector<8x1xf32>
    %29 = arith.select %27, %21, %28 : vector<8x1xi1>, vector<8x1xf32>
    %c0_9 = arith.constant 0 : index
    %c0_10 = arith.constant 0 : index
    %30 = vector.load %arg4[%c0_9, %c0_10] : memref<1x1xf32, #tpu.memory_space<vmem>>, vector<1x1xf32>
    %cst_11 = arith.constant dense<0.000000e+00> : vector<1xf32>
    %31 = vector.multi_reduction <add>, %29, %cst_11 [0] : vector<8x1xf32> to vector<1xf32>
    %32 = vector.shape_cast %31 : vector<1xf32> to vector<1x1xf32>
    %33 = arith.addf %30, %32 : vector<1x1xf32>
    %c0_12 = arith.constant 0 : index
    %c0_13 = arith.constant 0 : index
    %34 = vector.load %arg4[%c0_12, %c0_13] : memref<1x1xf32, #tpu.memory_space<vmem>>, vector<1x1xf32>
    tpu.vector_store %arg4[%c0_12, %c0_13], %33 {strides = array<i32>} : memref<1x1xf32, #tpu.memory_space<vmem>>, vector<1x1xf32>,
    %c0_i32_14 = arith.constant 0 : i32
    %35 = arith.cmpi eq, %arg0, %c0_i32_14 : i32
    %36 = arith.extui %35 : i1 to i32
    %c0_i32_15 = arith.constant 0 : i32
    %37 = arith.cmpi ne, %36, %c0_i32_15 : i32
    scf.if %37 {
      %c0_16 = arith.constant 0 : index
      %c0_17 = arith.constant 0 : index
      %38 = vector.load %arg4[%c0_16, %c0_17] : memref<1x1xf32, #tpu.memory_space<vmem>>, vector<1x1xf32>
      %cst_18 = arith.constant 8.000000e+00 : f32
      %39 = vector.broadcast %cst_18 : f32 to vector<1x1xf32>
      %40 = arith.divf %38, %39 : vector<1x1xf32>
      %c0_19 = arith.constant 0 : index
      %c0_20 = arith.constant 0 : index
      %41 = vector.load %arg3[%c0_19, %c0_20] : memref<1x1xf32, #tpu.memory_space<vmem>>, vector<1x1xf32>
      tpu.vector_store %arg3[%c0_19, %c0_20], %40 {strides = array<i32>} : memref<1x1xf32, #tpu.memory_space<vmem>>, vector<1x1xf32>,
    } else {
    }
    return
  }
  func.func @transform_0(%arg0: i32) -> (i32, i32) {
    %c0_i32 = arith.constant 0 : i32
    %c0_i32_0 = arith.constant 0 : i32
    return %arg0, %c0_i32 : i32, i32
  }
  func.func @transform_1(%arg0: i32) -> (i32, i32) {
    %c0_i32 = arith.constant 0 : i32
    return %arg0, %arg0 : i32, i32
  }
  func.func @transform_2(%arg0: i32) -> (i32, i32) {
    %c0_i32 = arith.constant 0 : i32
    %c0_i32_0 = arith.constant 0 : i32
    %c0_i32_1 = arith.constant 0 : i32
    return %c0_i32, %c0_i32_0 : i32, i32
  }
}

</mosaic_0001>

<llo_original>
// kernel: tpu_custom_call.1
$region0: #{tpu_custom_call.1}
  #allocation0 [shape = 'u32[]', space=smem, size = 0x4, offset = 0x4, fixed_abs, tag = 'smem constant byte address 0x4 - core index']
  #allocation1 [shape = 'u32[72,128]{1,0:T(1,128)}', space=vmem, size = 0x9000, scoped, tag = 'internal scratch']
  #allocation2 [shape = 'f32[1,1]{1,0:T(1,128)}', space=vmem, size = 0x200, scoped, tag = 'scratch operand']
  %s0 = inlined_call_operand.hbm [shape: f32[8,8], index: 0, kind: input, shape index: {}]
  %s1 = inlined_call_operand.hbm [shape: f32[8,8], index: 1, kind: input, shape index: {}]
  %s2 = inlined_call_operand.hbm [shape: f32[1,1], index: 2, kind: output, shape index: {}]
  %s3 = sld [smem:[#allocation0]]
  $region34: #{tpu_custom_call.1} parent=0
    _
  %s5 = ssub.s32 1, %s3
  %s6 = scalar_select 0, %s5, %s3
  $region1: #{tpu_custom_call.1} parent=0
    #allocation3 [shape = 'u8[4096]{0}', space=vmem, size = 0x1000, scoped, tag = 'input window, operand 0, single buffered']
    #allocation4 [shape = 's32[1]{0}', space=sflag, size = 0x4, scoped, tag = 'scoped memory for tpu_custom_call.1']
    #allocation5 [shape = 's32[1]{0}', space=sflag, size = 0x4, scoped, tag = 'scoped memory for tpu_custom_call.1']
    #allocation6 [shape = 'u8[4096]{0}', space=vmem, size = 0x1000, scoped, tag = 'input window, operand 1, single buffered']
    #allocation7 [shape = 's32[1]{0}', space=sflag, size = 0x4, scoped, tag = 'scoped memory for tpu_custom_call.1']
    #allocation8 [shape = 'u8[512]{0}', space=vmem, size = 0x400, scoped, tag = 'output window, operand 0, single buffered']
    %7 = vsyncpa [#allocation4], 0
    %8 = vsyncpa [#allocation7], 0
    %9 = vsyncpa [#allocation5], 0
    // Predicated region
    $region2: #{tpu_custom_call.1} parent=1 // pred_check
      _
    $region3: #{tpu_custom_call.1} parent=1 // pred_check_branch
      %11 = sbr.rel (0) target = $region5
    $region4: #{tpu_custom_call.1} parent=1 // pred_region
      %13 = vsyncadd [#allocation4], 0
      %s15 = sshll.u32 %s0, 4
      %s16 = int_to_ptr.hbm [resolvable:$true] %s15
      %s17 = sshll.u32 [#allocation3], 4
      %s18 = int_to_ptr.vmem [resolvable:$true] %s17
      %20 = dma.hbm_to_vmem [thread:$0]  %s16, 128, %s18, [#allocation4]
    $region5: #{tpu_custom_call.1} parent=1 // pred_fallthru
      _
    // Predicated region
    $region6: #{tpu_custom_call.1} parent=1 // pred_check
      _
    $region7: #{tpu_custom_call.1} parent=1 // pred_check_branch
      %22 = sbr.rel (0) target = $region9
    $region8: #{tpu_custom_call.1} parent=1 // pred_region
      %24 = vsyncadd [#allocation7], 0
      %s26 = sshll.u32 %s1, 4
      %s27 = int_to_ptr.hbm [resolvable:$true] %s26
      %s28 = sshll.u32 [#allocation6], 4
      %s29 = int_to_ptr.vmem [resolvable:$true] %s28
      %31 = dma.hbm_to_vmem [thread:$0]  %s27, 128, %s29, [#allocation7]
    $region9: #{tpu_custom_call.1} parent=1 // pred_fallthru
      _
    // Predicated region
    $region10: #{tpu_custom_call.1} parent=1 // pred_check
      _
    $region11: #{tpu_custom_call.1} parent=1 // pred_check_branch
      %33 = sbr.rel (0) target = $region13
    $region12: #{tpu_custom_call.1} parent=1 // pred_region
      %35 = dma.done [#allocation4], 128
    $region13: #{tpu_custom_call.1} parent=1 // pred_fallthru
      _
    // Predicated region
    $region14: #{tpu_custom_call.1} parent=1 // pred_check
      _
    $region15: #{tpu_custom_call.1} parent=1 // pred_check_branch
      %37 = sbr.rel (0) target = $region17
    $region16: #{tpu_custom_call.1} parent=1 // pred_region
      %39 = dma.done [#allocation7], 128
    $region17: #{tpu_custom_call.1} parent=1 // pred_fallthru
      _
    %p40 = scmp.eq.s32.totalorder 0, 0
    // Predicated region
    $region18: #{tpu_custom_call.1} parent=1 // pred_check
      %p41 = pneg %p40
    $region19: #{tpu_custom_call.1} parent=1 // pred_check_branch
      %43 = sbr.rel (%p41) target = $region21
    $region20: #{tpu_custom_call.1} parent=1 // pred_region
      %vm44 = vcmask 0
      %45 = vst.msk [vmem:[#allocation2] sm:$0x1] %vm44, 0.0
    $region21: #{tpu_custom_call.1} parent=1 // pred_fallthru
      _
    %v46 = vld [vmem:[#allocation3] sm:$0xff]
    %vm47 = vcmask 64512
    %v48 = vsel %vm47, %v46, -inf
    %49 = vmax.xlane.f32.xlu0 %v48
    %v50 = vpop.xlane.xlu0 %49
    %v51 = vsub.f32 %v46, %v50
    %v52 = vmul.f32 %v51, 1.442695
    %v53 = vpow.pop %v52
    %v54 = vsel %vm47, %v53, 0.0
    %55 = vadd.xlane.f32.xlu0 %v54
    %v56 = vpop.xlane.xlu0 %55
    %v57 = vlog2.pop %v56
    %v58 = vmul.f32 %v57, 0.6931472
    %v59 = vadd.f32 %v58, %v50
    %v60 = vld [vmem:[#allocation6] sm:$0xff]
    %v61 = vlaneseq
    %v62 = vshrl.u32 %v61, 7
    %v63 = vlaneseq
    %v64 = vand.u32 %v63, 127
    %vm65 = vcmp.eq.s32.totalorder %v62, %v64
    %v66 = vsel %vm65, %v60, 0.0
    %v67 = vsel %vm47, %v66, 0.0
    %68 = vadd.xlane.f32.xlu0 %v67
    %v69 = vpop.xlane.xlu0 %68
    %v70 = vsub.f32 %v59, %v69
    %s71 = smul.u32 0, 8
    %v72 = vstv %s71
    %v73 = vadd.s32 %v72, %v62
    %vm74 = vcmp.lt.s32.totalorder %v73, 8
    %v75 = vsel %vm74, %v70, 0.0
    %v76 = vld [vmem:[#allocation2] sm:$0x1]
    %v77 = vrot.slane %v75, 4
    %v78 = vadd.f32 %v75, %v77
    %v79 = vrot.slane %v78, 2
    %v80 = vadd.f32 %v78, %v79
    %v81 = vrot.slane %v80, 1
    %v82 = vadd.f32 %v80, %v81
    %v83 = vadd.f32 %v76, %v82
    %vm84 = vcmask 0
    %85 = vst.msk [vmem:[#allocation2] sm:$0x1] %vm84, %v83
    // Predicated region
    $region22: #{tpu_custom_call.1} parent=1 // pred_check
      %p86 = pneg %p40
    $region23: #{tpu_custom_call.1} parent=1 // pred_check_branch
      %88 = sbr.rel (%p86) target = $region25
    $region24: #{tpu_custom_call.1} parent=1 // pred_region
      %v89 = vld [vmem:[#allocation2] sm:$0x1]
      %v90 = vrcp.pop 8.0
      %v91 = vmul.f32 8.0, %v90
      %v92 = vsub.f32 1.0, %v91
      %v93 = vmul.f32 %v90, %v92
      %v94 = vadd.f32 %v90, %v93
      %vm95 = vweird.f32 %v90
      %v96 = vsel %vm95, %v90, %v94
      %v97 = vmul.f32 %v89, %v96
      %98 = vst.msk [vmem:[#allocation8] sm:$0x1] %vm84, %v97
    $region25: #{tpu_custom_call.1} parent=1 // pred_fallthru
      _
    // Predicated region
    $region26: #{tpu_custom_call.1} parent=1 // pred_check
      _
    $region27: #{tpu_custom_call.1} parent=1 // pred_check_branch
      %100 = sbr.rel (0) target = $region29
    $region28: #{tpu_custom_call.1} parent=1 // pred_region
      %102 = vsyncadd [#allocation5], 0
      %s104 = sshll.u32 [#allocation8], 4
      %s105 = int_to_ptr.vmem [resolvable:$true] %s104
      %s106 = sshll.u32 %s2, 4
      %s107 = int_to_ptr.hbm [resolvable:$true] %s106
      %109 = dma.vmem_to_hbm [thread:$0]  %s105, 16, %s107, [#allocation5]
    $region29: #{tpu_custom_call.1} parent=1 // pred_fallthru
      _
    // Predicated region
    $region30: #{tpu_custom_call.1} parent=1 // pred_check
      _
    $region31: #{tpu_custom_call.1} parent=1 // pred_check_branch
      %111 = sbr.rel (0) target = $region33
    $region32: #{tpu_custom_call.1} parent=1 // pred_region
      %113 = dma.done [#allocation5], 16
    $region33: #{tpu_custom_call.1} parent=1 // pred_fallthru
      _
    %114 = vsyncpa [#allocation4], 1
    %115 = vsyncpa [#allocation7], 1
    %116 = vsyncpa [#allocation5], 1

</llo_original>
